<compile_context>
chip_gen: v5e
topology: v5e:2x2
jax: 0.10.0
libtpu: 0.0.40
codegen_flags: <defaults>
</compile_context>

<pallas_src>
import functools

import jax
import jax.numpy as jnp
from jax.experimental import pallas as pl
from jax.experimental.pallas import tpu as pltpu

LANE = 128


def _round_up(v, m):
    return (v + m - 1) // m * m


def _pick_tile(npad):
    # npad is always a multiple of 128; pick the biggest friendly tile.
    for t in (512, 256, 128):
        if npad % t == 0:
            return t
    return npad


def _sage_layer_kernel(adj_ref, xk_ref, xi_ref, invdeg_ref, w_ref, b_ref,
                       out_ref, acc_ref, *, apply_relu: bool):
    """One row-tile of a fused SAGEConv (+ folded BN + ReLU) layer.

    acc_ref accumulates the (adj @ x) partial sums over the K grid axis; at the
    last K step the mean aggregation is finished and pushed through the two
    projection matmuls (neighbor term + root term) plus the folded bias.
    """
    k = pl.program_id(1)

    @pl.when(k == 0)
    def _():
        acc_ref[...] = jnp.zeros_like(acc_ref)

    # Partial reduction for the mean aggregation: adj_tile (TM, TK) @ x (TK, Cin).
    acc_ref[...] += jnp.dot(adj_ref[...], xk_ref[...],
                            preferred_element_type=jnp.float32)

    @pl.when(k == pl.num_programs(1) - 1)
    def _():
        cin_p = xi_ref.shape[1]
        # Mean over neighbors, back to bf16 for the MXU (stays in vregs).
        agg = (acc_ref[...] * invdeg_ref[...]).astype(jnp.bfloat16)
        # Stacked weight w = [Wl; Wr]; static, 128-aligned slices of the ref.
        h = jnp.dot(agg, w_ref[:cin_p, :], preferred_element_type=jnp.float32)
        h = h + jnp.dot(xi_ref[...], w_ref[cin_p:, :],
                        preferred_element_type=jnp.float32)
        h = h + b_ref[...]                                   # folded bias (+BN)
        if apply_relu:
            h = jnp.maximum(h, 0.0)
        out_ref[...] = h.astype(out_ref.dtype)


def sage_layer(adj_bf, x_bf, inv_deg, w, b, *, apply_relu: bool, out_dtype):
    """adj_bf: (Np, Np) bf16, x_bf: (Np, Cin_p) bf16, inv_deg: (Np, 1) f32,
    w: (2*Cin_p, Cout_p) bf16, b: (1, Cout_p) f32."""
    npad = adj_bf.shape[0]
    cin_p = x_bf.shape[1]
    cout_p = w.shape[1]
    tm = tk = _pick_tile(npad)
    grid = (npad // tm, npad // tk)
    out_itemsize = jnp.dtype(out_dtype).itemsize

    kernel = functools.partial(_sage_layer_kernel, apply_relu=apply_relu)

    flops = 2 * npad * npad * cin_p + 2 * npad * (2 * cin_p) * cout_p
    bytes_accessed = (adj_bf.size * 2 + 2 * x_bf.size * 2 + w.size * 2
                      + npad * 4 + npad * cout_p * out_itemsize)

    # Double-buffered input/output tiles + accumulator scratch, with headroom.
    vmem_bytes = (2 * (tm * tk * 2 + tk * cin_p * 2 + tm * cin_p * 2 + tm * 4
                       + tm * cout_p * out_itemsize)
                  + 2 * cin_p * cout_p * 2 + cout_p * 4
                  + tm * cin_p * 4)
    vmem_limit = int(min(max(2 * vmem_bytes, 32 << 20), 64 << 20))

    return pl.pallas_call(
        kernel,
        out_shape=jax.ShapeDtypeStruct((npad, cout_p), out_dtype),
        grid_spec=pltpu.PrefetchScalarGridSpec(
            num_scalar_prefetch=0,
            grid=grid,
            in_specs=[
                pl.BlockSpec((tm, tk), lambda i, k: (i, k)),            # adj tile
                pl.BlockSpec((tk, cin_p), lambda i, k: (k, 0)),         # x (aggregation operand)
                pl.BlockSpec((tm, cin_p), lambda i, k: (i, 0)),         # x (root / self)
                pl.BlockSpec((tm, 1), lambda i, k: (i, 0)),             # 1/deg
                pl.BlockSpec((2 * cin_p, cout_p), lambda i, k: (0, 0)), # stacked [Wl; Wr]
                pl.BlockSpec((1, cout_p), lambda i, k: (0, 0)),         # fused bias
            ],
            out_specs=pl.BlockSpec((tm, cout_p), lambda i, k: (i, 0)),
            scratch_shapes=[
                pltpu.VMEM((tm, cin_p), jnp.float32),       # aggregation accumulator
            ]),
        compiler_params=pltpu.CompilerParams(
            dimension_semantics=("parallel", "arbitrary"),
            vmem_limit_bytes=vmem_limit),
        cost_estimate=pl.CostEstimate(flops=int(flops), transcendentals=0,
                                      bytes_accessed=int(bytes_accessed)),
    )(adj_bf, x_bf, x_bf, inv_deg, w, b)


def init_sage_params(key, in_channels, hidden_channels, out_channels, num_layers):
    """Deterministic parameter init mirroring SAGE.__init__ shapes."""
    cins = [in_channels] + [hidden_channels] * (num_layers - 1)
    couts = [hidden_channels] * (num_layers - 1) + [out_channels]
    convs, bns = [], []
    for li in range(num_layers):
        cin, cout = cins[li], couts[li]
        key, k1, k2, k3 = jax.random.split(key, 4)
        scale = 1.0 / jnp.sqrt(jnp.float32(cin))
        wl = jax.random.uniform(k1, (cin, cout), jnp.float32, -scale, scale)  # lin_l weight^T
        wr = jax.random.uniform(k2, (cin, cout), jnp.float32, -scale, scale)  # lin_r weight^T
        bl = jax.random.uniform(k3, (1, cout), jnp.float32, -scale, scale)    # lin_l bias
        convs.append((wl, wr, bl))
        if li < num_layers - 1:
            bns.append((jnp.ones((1, cout), jnp.float32),    # gamma
                        jnp.zeros((1, cout), jnp.float32),   # beta
                        jnp.zeros((1, cout), jnp.float32),   # running_mean
                        jnp.ones((1, cout), jnp.float32)))   # running_var
    return convs, bns


def _fold_layer_params(wl, wr, bl, bn, cin_p, cout_p, eps=1e-5):
    """Fold inference BatchNorm into the projection, pad to lane width, and
    stack [Wl; Wr] so the SAGEConv projection uses one weight DMA."""
    cin, cout = wl.shape
    if bn is not None:
        gamma, beta, rmean, rvar = bn
        s = gamma / jnp.sqrt(rvar + eps)           # (1, cout)
        wl = wl * s
        wr = wr * s
        b = (bl - rmean) * s + beta
    else:
        b = bl
    wl_p = jnp.zeros((cin_p, cout_p), jnp.float32).at[:cin, :cout].set(wl)
    wr_p = jnp.zeros((cin_p, cout_p), jnp.float32).at[:cin, :cout].set(wr)
    w = jnp.concatenate([wl_p, wr_p], axis=0).astype(jnp.bfloat16)
    b_p = jnp.zeros((1, cout_p), jnp.float32).at[:, :cout].set(b)
    return w, b_p


def sage_forward(x, adj, convs, bns):
    """Forward pass of SAGE (inference mode)."""
    n, cin = x.shape
    npad = _round_up(n, LANE)

    # Pad nodes to a tile-friendly size (zero rows/cols never pollute real rows
    # because their adjacency columns are zero) and channels to the lane width.
    adj_p = jnp.zeros((npad, npad), jnp.float32).at[:n, :n].set(adj)
    deg = jnp.maximum(jnp.sum(adj_p, axis=1, keepdims=True), 1.0)
    inv_deg = (1.0 / deg).astype(jnp.float32)                # (Np, 1)
    adj_bf = adj_p.astype(jnp.bfloat16)                      # 0/1 -> lossless

    cin_p = _round_up(cin, LANE)
    h = jnp.zeros((npad, cin_p), jnp.bfloat16).at[:n, :cin].set(
        x.astype(jnp.bfloat16))

    num_layers = len(convs)
    for li in range(num_layers):
        wl, wr, bl = convs[li]
        last = li == num_layers - 1
        cout = wl.shape[1]
        cout_p = _round_up(cout, LANE)
        w, b = _fold_layer_params(wl, wr, bl, None if last else bns[li],
                                  h.shape[1], cout_p)
        h = sage_layer(adj_bf, h, inv_deg, w, b,
                       apply_relu=not last,
                       out_dtype=jnp.float32 if last else jnp.bfloat16)
        # F.dropout(training=False) is the identity -> omitted.

    out_channels = convs[-1][0].shape[1]
    return h[:n, :out_channels]


def sage_reference(x, adj, convs, bns, eps=1e-5):
    """Pure-JAX f32 reference (inference mode) for correctness checking."""
    deg = jnp.maximum(jnp.sum(adj, axis=1, keepdims=True), 1.0)
    h = x
    num_layers = len(convs)
    for li, (wl, wr, bl) in enumerate(convs):
        agg = (adj @ h) / deg
        h = agg @ wl + h @ wr + bl
        if li < num_layers - 1:
            gamma, beta, rmean, rvar = bns[li]
            h = (h - rmean) / jnp.sqrt(rvar + eps) * gamma + beta
            h = jnp.maximum(h, 0.0)
    return h


if __name__ == "__main__":
    # Small deterministic example: 64 nodes, 16 -> 32 -> 32 -> 8 channels.
    N = 64
    in_channels, hidden_channels, out_channels = 16, 32, 8
    num_layers = 3
    dropout = 0.5  # unused in inference mode

    key = jax.random.PRNGKey(0)
    key, kx, kadj, kp = jax.random.split(key, 4)

    x = jax.random.normal(kx, (N, in_channels), jnp.float32)

    # Random sparse-ish adjacency with self-loops so every node has degree >= 1.
    adj = (jax.random.uniform(kadj, (N, N)) < 0.1).astype(jnp.float32)
    adj = jnp.maximum(adj, jnp.eye(N, dtype=jnp.float32))

    convs, bns = init_sage_params(kp, in_channels, hidden_channels,
                                  out_channels, num_layers)

    out = sage_forward(x, adj, convs, bns)
    out = jax.block_until_ready(out)
    assert out.shape == (N, out_channels), out.shape
    assert bool(jnp.all(jnp.isfinite(out)))

    ref = sage_reference(x, adj, convs, bns)
    assert bool(jnp.allclose(out, ref, rtol=1e-1, atol=1e-1)), (
        float(jnp.max(jnp.abs(out - ref))))
    print("KERNEL_OK")
</pallas_src>

<mosaic_0001>
module attributes {stable_mosaic.version = 11 : i64} {
  func.func @_sage_layer_kernel(%arg0: i32, %arg1: i32, %arg2: memref<128x128xbf16, #tpu.memory_space<vmem>>, %arg3: memref<128x128xbf16, #tpu.memory_space<vmem>>, %arg4: memref<128x128xbf16, #tpu.memory_space<vmem>>, %arg5: memref<128x1xf32, #tpu.memory_space<vmem>>, %arg6: memref<256x128xbf16, #tpu.memory_space<vmem>>, %arg7: memref<1x128xf32, #tpu.memory_space<vmem>>, %arg8: memref<128x128xbf16, #tpu.memory_space<vmem>>, %arg9: memref<128x128xf32, #tpu.memory_space<vmem>>) attributes {dimension_semantics = [#tpu.dimension_semantics<parallel>, #tpu.dimension_semantics<arbitrary>], iteration_bounds = array<i64: 1, 1>, scalar_prefetch = 0 : i64, scratch_operands = 1 : i64, tpu.core_type = #tpu.core_type<tc>, window_params = [{transform_indices = @transform_0, window_bounds = array<i64: 128, 128>}, {transform_indices = @transform_1, window_bounds = array<i64: 128, 128>}, {transform_indices = @transform_2, window_bounds = array<i64: 128, 128>}, {transform_indices = @transform_3, window_bounds = array<i64: 128, 1>}, {pipeline_mode = #tpu.pipeline_mode<synchronous>, transform_indices = @transform_4, window_bounds = array<i64: 256, 128>}, {pipeline_mode = #tpu.pipeline_mode<synchronous>, transform_indices = @transform_5, window_bounds = array<i64: 1, 128>}, {transform_indices = @transform_6, window_bounds = array<i64: 128, 128>}]} {
    %c0_i32 = arith.constant 0 : i32
    %0 = arith.cmpi eq, %arg1, %c0_i32 : i32
    %1 = arith.extui %0 : i1 to i32
    %c0_i32_0 = arith.constant 0 : i32
    %2 = arith.cmpi ne, %1, %c0_i32_0 : i32
    scf.if %2 {
      %cst_10 = arith.constant 0.000000e+00 : f32
      %12 = vector.broadcast %cst_10 : f32 to vector<128x128xf32>
      %c0_11 = arith.constant 0 : index
      %c0_12 = arith.constant 0 : index
      %13 = vector.load %arg9[%c0_11, %c0_12] : memref<128x128xf32, #tpu.memory_space<vmem>>, vector<128x128xf32>
      tpu.vector_store %arg9[%c0_11, %c0_12], %12 {strides = array<i32>} : memref<128x128xf32, #tpu.memory_space<vmem>>, vector<128x128xf32>,
    } else {
    }
    %c0 = arith.constant 0 : index
    %c0_1 = arith.constant 0 : index
    %3 = vector.load %arg9[%c0, %c0_1] : memref<128x128xf32, #tpu.memory_space<vmem>>, vector<128x128xf32>
    %c0_2 = arith.constant 0 : index
    %c0_3 = arith.constant 0 : index
    %4 = vector.load %arg2[%c0_2, %c0_3] : memref<128x128xbf16, #tpu.memory_space<vmem>>, vector<128x128xbf16>
    %c0_4 = arith.constant 0 : index
    %c0_5 = arith.constant 0 : index
    %5 = vector.load %arg3[%c0_4, %c0_5] : memref<128x128xbf16, #tpu.memory_space<vmem>>, vector<128x128xbf16>
    %cst = arith.constant dense<0.000000e+00> : vector<128x128xf32>
    %6 = tpu.matmul %4, %5, %cst {dimension_numbers = #tpu.dot_dimension_numbers<[1], [0], [0], [1], [0, 0, 1, 1], [], []>} : vector<128x128xbf16>, vector<128x128xbf16>, vector<128x128xf32> -> vector<128x128xf32>
    %7 = arith.addf %3, %6 : vector<128x128xf32>
    %c0_6 = arith.constant 0 : index
    %c0_7 = arith.constant 0 : index
    %8 = vector.load %arg9[%c0_6, %c0_7] : memref<128x128xf32, #tpu.memory_space<vmem>>, vector<128x128xf32>
    tpu.vector_store %arg9[%c0_6, %c0_7], %7 {strides = array<i32>} : memref<128x128xf32, #tpu.memory_space<vmem>>, vector<128x128xf32>,
    %c0_i32_8 = arith.constant 0 : i32
    %9 = arith.cmpi eq, %arg1, %c0_i32_8 : i32
    %10 = arith.extui %9 : i1 to i32
    %c0_i32_9 = arith.constant 0 : i32
    %11 = arith.cmpi ne, %10, %c0_i32_9 : i32
    scf.if %11 {
      %c0_10 = arith.constant 0 : index
      %c0_11 = arith.constant 0 : index
      %12 = vector.load %arg9[%c0_10, %c0_11] : memref<128x128xf32, #tpu.memory_space<vmem>>, vector<128x128xf32>
      %c0_12 = arith.constant 0 : index
      %c0_13 = arith.constant 0 : index
      %13 = vector.load %arg5[%c0_12, %c0_13] : memref<128x1xf32, #tpu.memory_space<vmem>>, vector<128x1xf32>
      %14 = vector.broadcast %13 : vector<128x1xf32> to vector<128x128xf32>
      %15 = arith.mulf %12, %14 : vector<128x128xf32>
      %16 = arith.truncf %15 : vector<128x128xf32> to vector<128x128xbf16>
      %c0_14 = arith.constant 0 : index
      %c0_15 = arith.constant 0 : index
      %17 = vector.load %arg6[%c0_14, %c0_15] : memref<256x128xbf16, #tpu.memory_space<vmem>>, vector<128x128xbf16>
      %cst_16 = arith.constant dense<0.000000e+00> : vector<128x128xf32>
      %18 = tpu.matmul %16, %17, %cst_16 {dimension_numbers = #tpu.dot_dimension_numbers<[1], [0], [0], [1], [0, 0, 1, 1], [], []>} : vector<128x128xbf16>, vector<128x128xbf16>, vector<128x128xf32> -> vector<128x128xf32>
      %c0_17 = arith.constant 0 : index
      %c0_18 = arith.constant 0 : index
      %19 = vector.load %arg4[%c0_17, %c0_18] : memref<128x128xbf16, #tpu.memory_space<vmem>>, vector<128x128xbf16>
      %c128 = arith.constant 128 : index
      %c0_19 = arith.constant 0 : index
      %20 = vector.load %arg6[%c128, %c0_19] : memref<256x128xbf16, #tpu.memory_space<vmem>>, vector<128x128xbf16>
      %cst_20 = arith.constant dense<0.000000e+00> : vector<128x128xf32>
      %21 = tpu.matmul %19, %20, %cst_20 {dimension_numbers = #tpu.dot_dimension_numbers<[1], [0], [0], [1], [0, 0, 1, 1], [], []>} : vector<128x128xbf16>, vector<128x128xbf16>, vector<128x128xf32> -> vector<128x128xf32>
      %22 = arith.addf %18, %21 : vector<128x128xf32>
      %c0_21 = arith.constant 0 : index
      %c0_22 = arith.constant 0 : index
      %23 = vector.load %arg7[%c0_21, %c0_22] : memref<1x128xf32, #tpu.memory_space<vmem>>, vector<1x128xf32>
      %24 = vector.broadcast %23 : vector<1x128xf32> to vector<128x128xf32>
      %25 = arith.addf %22, %24 : vector<128x128xf32>
      %cst_23 = arith.constant 0.000000e+00 : f32
      %26 = vector.broadcast %cst_23 : f32 to vector<128x128xf32>
      %27 = arith.maximumf %25, %26 : vector<128x128xf32>
      %28 = arith.truncf %27 : vector<128x128xf32> to vector<128x128xbf16>
      %c0_24 = arith.constant 0 : index
      %c0_25 = arith.constant 0 : index
      %29 = vector.load %arg8[%c0_24, %c0_25] : memref<128x128xbf16, #tpu.memory_space<vmem>>, vector<128x128xbf16>
      tpu.vector_store %arg8[%c0_24, %c0_25], %28 {strides = array<i32>} : memref<128x128xbf16, #tpu.memory_space<vmem>>, vector<128x128xbf16>,
    } else {
    }
    return
  }
  func.func @transform_0(%arg0: i32, %arg1: i32) -> (i32, i32) {
    %c0_i32 = arith.constant 0 : i32
    return %arg0, %arg1 : i32, i32
  }
  func.func @transform_1(%arg0: i32, %arg1: i32) -> (i32, i32) {
    %c0_i32 = arith.constant 0 : i32
    %c0_i32_0 = arith.constant 0 : i32
    return %arg1, %c0_i32 : i32, i32
  }
  func.func @transform_2(%arg0: i32, %arg1: i32) -> (i32, i32) {
    %c0_i32 = arith.constant 0 : i32
    %c0_i32_0 = arith.constant 0 : i32
    return %arg0, %c0_i32 : i32, i32
  }
  func.func @transform_3(%arg0: i32, %arg1: i32) -> (i32, i32) {
    %c0_i32 = arith.constant 0 : i32
    %c0_i32_0 = arith.constant 0 : i32
    return %arg0, %c0_i32 : i32, i32
  }
  func.func @transform_4(%arg0: i32, %arg1: i32) -> (i32, i32) {
    %c0_i32 = arith.constant 0 : i32
    %c0_i32_0 = arith.constant 0 : i32
    %c0_i32_1 = arith.constant 0 : i32
    return %c0_i32, %c0_i32_0 : i32, i32
  }
  func.func @transform_5(%arg0: i32, %arg1: i32) -> (i32, i32) {
    %c0_i32 = arith.constant 0 : i32
    %c0_i32_0 = arith.constant 0 : i32
    %c0_i32_1 = arith.constant 0 : i32
    return %c0_i32, %c0_i32_0 : i32, i32
  }
  func.func @transform_6(%arg0: i32, %arg1: i32) -> (i32, i32) {
    %c0_i32 = arith.constant 0 : i32
    %c0_i32_0 = arith.constant 0 : i32
    return %arg0, %c0_i32 : i32, i32
  }
}

</mosaic_0001>

<llo_original>
// kernel: tpu_custom_call.1
$region0: #{tpu_custom_call.1}
  #allocation0 [shape = 'u32[]', space=smem, size = 0x4, offset = 0x4, fixed_abs, tag = 'smem constant byte address 0x4 - core index']
  #allocation1 [shape = 'u32[72,128]{1,0:T(1,128)}', space=vmem, size = 0x9000, scoped, tag = 'internal scratch']
  #allocation2 [shape = 'f32[128,128]{1,0:T(8,128)}', space=vmem, size = 0x10000, scoped, tag = 'scratch operand']
  %s0 = inlined_call_operand.hbm [shape: bf16[128,128], index: 0, kind: input, shape index: {}]
  %s1 = inlined_call_operand.hbm [shape: bf16[128,128], index: 1, kind: input, shape index: {}]
  %s2 = inlined_call_operand.hbm [shape: bf16[128,128], index: 2, kind: input, shape index: {}]
  %s3 = inlined_call_operand.vmem [shape: f32[128,1], index: 3, kind: input, shape index: {}]
  %s4 = inlined_call_operand.vmem [shape: bf16[256,128], index: 4, kind: input, shape index: {}]
  %s5 = inlined_call_operand.vmem [shape: f32[1,128], index: 5, kind: input, shape index: {}]
  %s6 = inlined_call_operand.hbm [shape: bf16[128,128], index: 6, kind: output, shape index: {}]
  %s7 = sld [smem:[#allocation0]]
  $region54: #{tpu_custom_call.1} parent=0
    _
  %s9 = ssub.s32 1, %s7
  %s10 = scalar_select 0, %s9, %s7
  $region1: #{tpu_custom_call.1} parent=0
    #allocation3 [shape = 'u8[32768]{0}', space=vmem, size = 0x8000, scoped, tag = 'input window, operand 0, single buffered']
    #allocation4 [shape = 's32[1]{0}', space=sflag, size = 0x4, scoped, tag = 'scoped memory for tpu_custom_call.1']
    #allocation5 [shape = 's32[1]{0}', space=sflag, size = 0x4, scoped, tag = 'scoped memory for tpu_custom_call.1']
    #allocation6 [shape = 'u8[32768]{0}', space=vmem, size = 0x8000, scoped, tag = 'input window, operand 1, single buffered']
    #allocation7 [shape = 's32[1]{0}', space=sflag, size = 0x4, scoped, tag = 'scoped memory for tpu_custom_call.1']
    #allocation8 [shape = 'u8[32768]{0}', space=vmem, size = 0x8000, scoped, tag = 'input window, operand 2, single buffered']
    #allocation9 [shape = 'u8[32768]{0}', space=vmem, size = 0x8000, scoped, tag = 'output window, operand 0, single buffered']
    %11 = vsyncpa [#allocation4], 0
    %12 = vsyncpa [#allocation7], 0
    %13 = vsyncpa [#allocation5], 0
    // Predicated region
    $region2: #{tpu_custom_call.1} parent=1 // pred_check
      _
    $region3: #{tpu_custom_call.1} parent=1 // pred_check_branch
      %15 = sbr.rel (0) target = $region5
    $region4: #{tpu_custom_call.1} parent=1 // pred_region
      %17 = vsyncadd [#allocation4], 0
      %s18 = sshll.u32 %s0, 4
      %s19 = int_to_ptr.hbm [resolvable:$true] %s18
      %s20 = sshll.u32 [#allocation3], 4
      %s21 = int_to_ptr.vmem [resolvable:$true] %s20
      %26 = dma.hbm_to_vmem [thread:$0]  %s19, 1024, %s21, [#allocation4], 64, 64, 4
    $region5: #{tpu_custom_call.1} parent=1 // pred_fallthru
      _
    // Predicated region
    $region6: #{tpu_custom_call.1} parent=1 // pred_check
      _
    $region7: #{tpu_custom_call.1} parent=1 // pred_check_branch
      %28 = sbr.rel (0) target = $region9
    $region8: #{tpu_custom_call.1} parent=1 // pred_region
      %30 = vsyncadd [#allocation7], 0
      %s31 = sshll.u32 %s1, 4
      %s32 = int_to_ptr.hbm [resolvable:$true] %s31
      %s33 = sshll.u32 [#allocation6], 4
      %s34 = int_to_ptr.vmem [resolvable:$true] %s33
      %39 = dma.hbm_to_vmem [thread:$0]  %s32, 1024, %s34, [#allocation7], 64, 64, 4
    $region9: #{tpu_custom_call.1} parent=1 // pred_fallthru
      _
    // Predicated region
    $region10: #{tpu_custom_call.1} parent=1 // pred_check
      _
    $region11: #{tpu_custom_call.1} parent=1 // pred_check_branch
      %41 = sbr.rel (0) target = $region13
    $region12: #{tpu_custom_call.1} parent=1 // pred_region
      %43 = vsyncadd [#allocation7], 0
      %s44 = sshll.u32 %s2, 4
      %s45 = int_to_ptr.hbm [resolvable:$true] %s44
      %s46 = sshll.u32 [#allocation8], 4
      %s47 = int_to_ptr.vmem [resolvable:$true] %s46
      %52 = dma.hbm_to_vmem [thread:$0]  %s45, 1024, %s47, [#allocation7], 64, 64, 4
    $region13: #{tpu_custom_call.1} parent=1 // pred_fallthru
      _
    // Predicated region
    $region14: #{tpu_custom_call.1} parent=1 // pred_check
      _
    $region15: #{tpu_custom_call.1} parent=1 // pred_check_branch
      %54 = sbr.rel (0) target = $region17
    $region16: #{tpu_custom_call.1} parent=1 // pred_region
      _
    $region17: #{tpu_custom_call.1} parent=1 // pred_fallthru
      _
    // Predicated region
    $region18: #{tpu_custom_call.1} parent=1 // pred_check
      _
    $region19: #{tpu_custom_call.1} parent=1 // pred_check_branch
      %56 = sbr.rel (0) target = $region21
    $region20: #{tpu_custom_call.1} parent=1 // pred_region
      _
    $region21: #{tpu_custom_call.1} parent=1 // pred_fallthru
      _
    // Predicated region
    $region22: #{tpu_custom_call.1} parent=1 // pred_check
      _
    $region23: #{tpu_custom_call.1} parent=1 // pred_check_branch
      %58 = sbr.rel (0) target = $region25
    $region24: #{tpu_custom_call.1} parent=1 // pred_region
      _
    $region25: #{tpu_custom_call.1} parent=1 // pred_fallthru
      _
    // Predicated region
    $region26: #{tpu_custom_call.1} parent=1 // pred_check
      _
    $region27: #{tpu_custom_call.1} parent=1 // pred_check_branch
      %60 = sbr.rel (0) target = $region29
    $region28: #{tpu_custom_call.1} parent=1 // pred_region
      %62 = dma.done [#allocation4], 1024
    $region29: #{tpu_custom_call.1} parent=1 // pred_fallthru
      _
    // Predicated region
    $region30: #{tpu_custom_call.1} parent=1 // pred_check
      _
    $region31: #{tpu_custom_call.1} parent=1 // pred_check_branch
      %64 = sbr.rel (0) target = $region33
    $region32: #{tpu_custom_call.1} parent=1 // pred_region
      %66 = dma.done [#allocation7], 1024
    $region33: #{tpu_custom_call.1} parent=1 // pred_fallthru
      _
    // Predicated region
    $region34: #{tpu_custom_call.1} parent=1 // pred_check
      _
    $region35: #{tpu_custom_call.1} parent=1 // pred_check_branch
      %68 = sbr.rel (0) target = $region37
    $region36: #{tpu_custom_call.1} parent=1 // pred_region
      %70 = dma.done [#allocation7], 1024
    $region37: #{tpu_custom_call.1} parent=1 // pred_fallthru
      _
    %p71 = scmp.eq.s32.totalorder 0, 0
    // Predicated region
    $region38: #{tpu_custom_call.1} parent=1 // pred_check
      %p72 = pneg %p71
    $region39: #{tpu_custom_call.1} parent=1 // pred_check_branch
      %74 = sbr.rel (%p72) target = $region41
    $region40: #{tpu_custom_call.1} parent=1 // pred_region
      %75 = vst [vmem:[#allocation2] sm:$0xff] 0.0
      %76 = vst [vmem:[#allocation2 + $0x8] sm:$0xff] 0.0
      %77 = vst [vmem:[#allocation2 + $0x10] sm:$0xff] 0.0
      %78 = vst [vmem:[#allocation2 + $0x18] sm:$0xff] 0.0
      %79 = vst [vmem:[#allocation2 + $0x20] sm:$0xff] 0.0
      %80 = vst [vmem:[#allocation2 + $0x28] sm:$0xff] 0.0
      %81 = vst [vmem:[#allocation2 + $0x30] sm:$0xff] 0.0
      %82 = vst [vmem:[#allocation2 + $0x38] sm:$0xff] 0.0
      %83 = vst [vmem:[#allocation2 + $0x40] sm:$0xff] 0.0
      %84 = vst [vmem:[#allocation2 + $0x48] sm:$0xff] 0.0
      %85 = vst [vmem:[#allocation2 + $0x50] sm:$0xff] 0.0
      %86 = vst [vmem:[#allocation2 + $0x58] sm:$0xff] 0.0
      %87 = vst [vmem:[#allocation2 + $0x60] sm:$0xff] 0.0
      %88 = vst [vmem:[#allocation2 + $0x68] sm:$0xff] 0.0
      %89 = vst [vmem:[#allocation2 + $0x70] sm:$0xff] 0.0
      %90 = vst [vmem:[#allocation2 + $0x78] sm:$0xff] 0.0
    $region41: #{tpu_custom_call.1} parent=1 // pred_fallthru
      _
    %v91 = vld [vmem:[#allocation2] sm:$0xff]
    %v92 = vld [vmem:[#allocation2 + $0x8] sm:$0xff]
    %v93 = vld [vmem:[#allocation2 + $0x10] sm:$0xff]
    %v94 = vld [vmem:[#allocation2 + $0x18] sm:$0xff]
    %v95 = vld [vmem:[#allocation2 + $0x20] sm:$0xff]
    %v96 = vld [vmem:[#allocation2 + $0x28] sm:$0xff]
    %v97 = vld [vmem:[#allocation2 + $0x30] sm:$0xff]
    %v98 = vld [vmem:[#allocation2 + $0x38] sm:$0xff]
    %v99 = vld [vmem:[#allocation2 + $0x40] sm:$0xff]
    %v100 = vld [vmem:[#allocation2 + $0x48] sm:$0xff]
    %v101 = vld [vmem:[#allocation2 + $0x50] sm:$0xff]
    %v102 = vld [vmem:[#allocation2 + $0x58] sm:$0xff]
    %v103 = vld [vmem:[#allocation2 + $0x60] sm:$0xff]
    %v104 = vld [vmem:[#allocation2 + $0x68] sm:$0xff]
    %v105 = vld [vmem:[#allocation2 + $0x70] sm:$0xff]
    %v106 = vld [vmem:[#allocation2 + $0x78] sm:$0xff]
    %v107 = vld [vmem:[#allocation3] sm:$0xf]
    %v108 = vld [vmem:[#allocation3 + $0x4] sm:$0xf]
    %v109 = vld [vmem:[#allocation3 + $0x8] sm:$0xf]
    %v110 = vld [vmem:[#allocation3 + $0xc] sm:$0xf]
    %v111 = vld [vmem:[#allocation3 + $0x10] sm:$0xf]
    %v112 = vld [vmem:[#allocation3 + $0x14] sm:$0xf]
    %v113 = vld [vmem:[#allocation3 + $0x18] sm:$0xf]
    %v114 = vld [vmem:[#allocation3 + $0x1c] sm:$0xf]
    %v115 = vld [vmem:[#allocation3 + $0x20] sm:$0xf]
    %v116 = vld [vmem:[#allocation3 + $0x24] sm:$0xf]
    %v117 = vld [vmem:[#allocation3 + $0x28] sm:$0xf]
    %v118 = vld [vmem:[#allocation3 + $0x2c] sm:$0xf]
    %v119 = vld [vmem:[#allocation3 + $0x30] sm:$0xf]
    %v120 = vld [vmem:[#allocation3 + $0x34] sm:$0xf]
    %v121 = vld [vmem:[#allocation3 + $0x38] sm:$0xf]
    %v122 = vld [vmem:[#allocation3 + $0x3c] sm:$0xf]
    %v123 = vld [vmem:[#allocation6] sm:$0xf]
    %v124 = vld [vmem:[#allocation6 + $0x4] sm:$0xf]
    %v125 = vld [vmem:[#allocation6 + $0x8] sm:$0xf]
    %v126 = vld [vmem:[#allocation6 + $0xc] sm:$0xf]
    %v127 = vld [vmem:[#allocation6 + $0x10] sm:$0xf]
    %v128 = vld [vmem:[#allocation6 + $0x14] sm:$0xf]
    %v129 = vld [vmem:[#allocation6 + $0x18] sm:$0xf]
    %v130 = vld [vmem:[#allocation6 + $0x1c] sm:$0xf]
    %v131 = vld [vmem:[#allocation6 + $0x20] sm:$0xf]
    %v132 = vld [vmem:[#allocation6 + $0x24] sm:$0xf]
    %v133 = vld [vmem:[#allocation6 + $0x28] sm:$0xf]
    %v134 = vld [vmem:[#allocation6 + $0x2c] sm:$0xf]
    %v135 = vld [vmem:[#allocation6 + $0x30] sm:$0xf]
    %v136 = vld [vmem:[#allocation6 + $0x34] sm:$0xf]
    %v137 = vld [vmem:[#allocation6 + $0x38] sm:$0xf]
    %v138 = vld [vmem:[#allocation6 + $0x3c] sm:$0xf]
    %v155 = vunpack.c.l.b16 %v107
    %v156 = vunpack.c.l.b16 %v108
    %v157 = vunpack.c.l.b16 %v109
    %v158 = vunpack.c.l.b16 %v110
    %v159 = vunpack.c.l.b16 %v111
    %v160 = vunpack.c.l.b16 %v112
    %v161 = vunpack.c.l.b16 %v113
    %v162 = vunpack.c.l.b16 %v114
    %v163 = vunpack.c.l.b16 %v115
    %v164 = vunpack.c.l.b16 %v116
    %v165 = vunpack.c.l.b16 %v117
    %v166 = vunpack.c.l.b16 %v118
    %v167 = vunpack.c.l.b16 %v119
    %v168 = vunpack.c.l.b16 %v120
    %v169 = vunpack.c.l.b16 %v121
    %v170 = vunpack.c.l.b16 %v122
    %v171 = vpack.c.b16 %v156, %v155
    %v172 = vpack.c.b16 %v158, %v157
    %v173 = vpack.c.b16 %v160, %v159
    %v174 = vpack.c.b16 %v162, %v161
    %v175 = vpack.c.b16 %v164, %v163
    %v176 = vpack.c.b16 %v166, %v165
    %v177 = vpack.c.b16 %v168, %v167
    %v178 = vpack.c.b16 %v170, %v169
    %v203 = vunpack.c.l.b16 %v123
    %v204 = vunpack.c.l.b16 %v124
    %v205 = vunpack.c.l.b16 %v125
    %v206 = vunpack.c.l.b16 %v126
    %v207 = vunpack.c.l.b16 %v127
    %v208 = vunpack.c.l.b16 %v128
    %v209 = vunpack.c.l.b16 %v129
    %v210 = vunpack.c.l.b16 %v130
    %v211 = vunpack.c.l.b16 %v131
    %v212 = vunpack.c.l.b16 %v132
    %v213 = vunpack.c.l.b16 %v133
    %v214 = vunpack.c.l.b16 %v134
    %v215 = vunpack.c.l.b16 %v135
    %v216 = vunpack.c.l.b16 %v136
    %v217 = vunpack.c.l.b16 %v137
    %v218 = vunpack.c.l.b16 %v138
    %v219 = vpack.c.b16 %v204, %v203
    %v220 = vpack.c.b16 %v206, %v205
    %v221 = vpack.c.b16 %v208, %v207
    %v222 = vpack.c.b16 %v210, %v209
    %v223 = vpack.c.b16 %v212, %v211
    %v224 = vpack.c.b16 %v214, %v213
    %v225 = vpack.c.b16 %v216, %v215
    %v226 = vpack.c.b16 %v218, %v217
    %235 = vmatpush.bf16.msra.mxu0 %v226
    %236 = vmatpush.bf16.msra.mxu0 %v225
    %237 = vmatpush.bf16.msra.mxu0 %v224
    %238 = vmatpush.bf16.msra.mxu0 %v223
    %239 = vmatpush.bf16.msra.mxu0 %v222
    %240 = vmatpush.bf16.msra.mxu0 %v221
    %241 = vmatpush.bf16.msra.mxu0 %v220
    %242 = vmatpush.bf16.msra.mxu0 %v219
    %243 = vmatmul.bf16.gmra.mxu0 %v171
    %v244 = vpop.f32.mrf.mxu0
    %v245 = vadd.f32 0.0, %v244
    %v246 = vpop.f32.mrf.mxu0
    %v247 = vadd.f32 0.0, %v246
    %248 = vmatmul.bf16.gmra.mxu0 %v172
    %v249 = vpop.f32.mrf.mxu0
    %v250 = vadd.f32 0.0, %v249
    %v251 = vpop.f32.mrf.mxu0
    %v252 = vadd.f32 0.0, %v251
    %253 = vmatmul.bf16.gmra.mxu0 %v173
    %v254 = vpop.f32.mrf.mxu0
    %v255 = vadd.f32 0.0, %v254
    %v256 = vpop.f32.mrf.mxu0
    %v257 = vadd.f32 0.0, %v256
    %258 = vmatmul.bf16.gmra.mxu0 %v174
    %v259 = vpop.f32.mrf.mxu0
    %v260 = vadd.f32 0.0, %v259
    %v261 = vpop.f32.mrf.mxu0
    %v262 = vadd.f32 0.0, %v261
    %263 = vmatmul.bf16.gmra.mxu0 %v175
    %v264 = vpop.f32.mrf.mxu0
    %v265 = vadd.f32 0.0, %v264
    %v266 = vpop.f32.mrf.mxu0
    %v267 = vadd.f32 0.0, %v266
    %268 = vmatmul.bf16.gmra.mxu0 %v176
    %v269 = vpop.f32.mrf.mxu0
    %v270 = vadd.f32 0.0, %v269
    %v271 = vpop.f32.mrf.mxu0
    %v272 = vadd.f32 0.0, %v271
    %273 = vmatmul.bf16.gmra.mxu0 %v177
    %v274 = vpop.f32.mrf.mxu0
    %v275 = vadd.f32 0.0, %v274
    %v276 = vpop.f32.mrf.mxu0
    %v277 = vadd.f32 0.0, %v276
    %278 = vmatmul.bf16.gmra.mxu0 %v178
    %v279 = vpop.f32.mrf.mxu0
    %v280 = vadd.f32 0.0, %v279
    %v281 = vpop.f32.mrf.mxu0
    %v282 = vadd.f32 0.0, %v281
    %283 = vdwg.mxu0
    %v284 = vadd.f32 %v91, %v245
    %v285 = vadd.f32 %v92, %v247
    %v286 = vadd.f32 %v93, %v250
    %v287 = vadd.f32 %v94, %v252
    %v288 = vadd.f32 %v95, %v255
    %v289 = vadd.f32 %v96, %v257
    %v290 = vadd.f32 %v97, %v260
    %v291 = vadd.f32 %v98, %v262
    %v292 = vadd.f32 %v99, %v265
    %v293 = vadd.f32 %v100, %v267
    %v294 = vadd.f32 %v101, %v270
    %v295 = vadd.f32 %v102, %v272
    %v296 = vadd.f32 %v103, %v275
    %v297 = vadd.f32 %v104, %v277
    %v298 = vadd.f32 %v105, %v280
    %v299 = vadd.f32 %v106, %v282
    %300 = vst [vmem:[#allocation2] sm:$0xff] %v284
    %301 = vst [vmem:[#allocation2 + $0x8] sm:$0xff] %v285
    %302 = vst [vmem:[#allocation2 + $0x10] sm:$0xff] %v286
    %303 = vst [vmem:[#allocation2 + $0x18] sm:$0xff] %v287
    %304 = vst [vmem:[#allocation2 + $0x20] sm:$0xff] %v288
    %305 = vst [vmem:[#allocation2 + $0x28] sm:$0xff] %v289
    %306 = vst [vmem:[#allocation2 + $0x30] sm:$0xff] %v290
    %307 = vst [vmem:[#allocation2 + $0x38] sm:$0xff] %v291
    %308 = vst [vmem:[#allocation2 + $0x40] sm:$0xff] %v292
    %309 = vst [vmem:[#allocation2 + $0x48] sm:$0xff] %v293
    %310 = vst [vmem:[#allocation2 + $0x50] sm:$0xff] %v294
    %311 = vst [vmem:[#allocation2 + $0x58] sm:$0xff] %v295
    %312 = vst [vmem:[#allocation2 + $0x60] sm:$0xff] %v296
    %313 = vst [vmem:[#allocation2 + $0x68] sm:$0xff] %v297
    %314 = vst [vmem:[#allocation2 + $0x70] sm:$0xff] %v298
    %315 = vst [vmem:[#allocation2 + $0x78] sm:$0xff] %v299
    // Predicated region
    $region42: #{tpu_custom_call.1} parent=1 // pred_check
      %p316 = pneg %p71
    $region43: #{tpu_custom_call.1} parent=1 // pred_check_branch
      %318 = sbr.rel (%p316) target = $region45
    $region44: #{tpu_custom_call.1} parent=1 // pred_region
      %v319 = vld [vmem:[#allocation2] sm:$0xff]
      %v320 = vld [vmem:[#allocation2 + $0x8] sm:$0xff]
      %v321 = vld [vmem:[#allocation2 + $0x10] sm:$0xff]
      %v322 = vld [vmem:[#allocation2 + $0x18] sm:$0xff]
      %v323 = vld [vmem:[#allocation2 + $0x20] sm:$0xff]
      %v324 = vld [vmem:[#allocation2 + $0x28] sm:$0xff]
      %v325 = vld [vmem:[#allocation2 + $0x30] sm:$0xff]
      %v326 = vld [vmem:[#allocation2 + $0x38] sm:$0xff]
      %v327 = vld [vmem:[#allocation2 + $0x40] sm:$0xff]
      %v328 = vld [vmem:[#allocation2 + $0x48] sm:$0xff]
      %v329 = vld [vmem:[#allocation2 + $0x50] sm:$0xff]
      %v330 = vld [vmem:[#allocation2 + $0x58] sm:$0xff]
      %v331 = vld [vmem:[#allocation2 + $0x60] sm:$0xff]
      %v332 = vld [vmem:[#allocation2 + $0x68] sm:$0xff]
      %v333 = vld [vmem:[#allocation2 + $0x70] sm:$0xff]
      %v334 = vld [vmem:[#allocation2 + $0x78] sm:$0xff]
      %v335 = vld [vmem:[%s3] sm:$0xff]
      %v336 = vld [vmem:[%s3 + $0x8] sm:$0xff]
      %v337 = vld [vmem:[%s3 + $0x10] sm:$0xff]
      %v338 = vld [vmem:[%s3 + $0x18] sm:$0xff]
      %v339 = vld [vmem:[%s3 + $0x20] sm:$0xff]
      %v340 = vld [vmem:[%s3 + $0x28] sm:$0xff]
      %v341 = vld [vmem:[%s3 + $0x30] sm:$0xff]
      %v342 = vld [vmem:[%s3 + $0x38] sm:$0xff]
      %v343 = vld [vmem:[%s3 + $0x40] sm:$0xff]
      %v344 = vld [vmem:[%s3 + $0x48] sm:$0xff]
      %v345 = vld [vmem:[%s3 + $0x50] sm:$0xff]
      %v346 = vld [vmem:[%s3 + $0x58] sm:$0xff]
      %v347 = vld [vmem:[%s3 + $0x60] sm:$0xff]
      %v348 = vld [vmem:[%s3 + $0x68] sm:$0xff]
      %v349 = vld [vmem:[%s3 + $0x70] sm:$0xff]
      %v350 = vld [vmem:[%s3 + $0x78] sm:$0xff]
      %352 = vset.pattern.permute.xlu0 0
      %353 = vperm.xlu0 %352, %v335
      %v354 = vpop.permute.xlu0 %353
      %357 = vset.pattern.permute.xlu0 0
      %358 = vperm.xlu0 %357, %v336
      %v359 = vpop.permute.xlu0 %358
      %362 = vset.pattern.permute.xlu0 0
      %363 = vperm.xlu0 %362, %v337
      %v364 = vpop.permute.xlu0 %363
      %367 = vset.pattern.permute.xlu0 0
      %368 = vperm.xlu0 %367, %v338
      %v369 = vpop.permute.xlu0 %368
      %372 = vset.pattern.permute.xlu0 0
      %373 = vperm.xlu0 %372, %v339
      %v374 = vpop.permute.xlu0 %373
      %377 = vset.pattern.permute.xlu0 0
      %378 = vperm.xlu0 %377, %v340
      %v379 = vpop.permute.xlu0 %378
      %382 = vset.pattern.permute.xlu0 0
      %383 = vperm.xlu0 %382, %v341
      %v384 = vpop.permute.xlu0 %383
      %387 = vset.pattern.permute.xlu0 0
      %388 = vperm.xlu0 %387, %v342
      %v389 = vpop.permute.xlu0 %388
      %392 = vset.pattern.permute.xlu0 0
      %393 = vperm.xlu0 %392, %v343
      %v394 = vpop.permute.xlu0 %393
      %397 = vset.pattern.permute.xlu0 0
      %398 = vperm.xlu0 %397, %v344
      %v399 = vpop.permute.xlu0 %398
      %402 = vset.pattern.permute.xlu0 0
      %403 = vperm.xlu0 %402, %v345
      %v404 = vpop.permute.xlu0 %403
      %407 = vset.pattern.permute.xlu0 0
      %408 = vperm.xlu0 %407, %v346
      %v409 = vpop.permute.xlu0 %408
      %412 = vset.pattern.permute.xlu0 0
      %413 = vperm.xlu0 %412, %v347
      %v414 = vpop.permute.xlu0 %413
      %417 = vset.pattern.permute.xlu0 0
      %418 = vperm.xlu0 %417, %v348
      %v419 = vpop.permute.xlu0 %418
      %422 = vset.pattern.permute.xlu0 0
      %423 = vperm.xlu0 %422, %v349
      %v424 = vpop.permute.xlu0 %423
      %427 = vset.pattern.permute.xlu0 0
      %428 = vperm.xlu0 %427, %v350
      %v429 = vpop.permute.xlu0 %428
      %v431 = vmul.f32 %v319, %v354
      %v432 = vmul.f32 %v320, %v359
      %v433 = vmul.f32 %v321, %v364
      %v434 = vmul.f32 %v322, %v369
      %v435 = vmul.f32 %v323, %v374
      %v436 = vmul.f32 %v324, %v379
      %v437 = vmul.f32 %v325, %v384
      %v438 = vmul.f32 %v326, %v389
      %v439 = vmul.f32 %v327, %v394
      %v440 = vmul.f32 %v328, %v399
      %v441 = vmul.f32 %v329, %v404
      %v442 = vmul.f32 %v330, %v409
      %v443 = vmul.f32 %v331, %v414
      %v444 = vmul.f32 %v332, %v419
      %v445 = vmul.f32 %v333, %v424
      %v446 = vmul.f32 %v334, %v429
      %v447 = vpack.c.bf16 %v432, %v431
      %v448 = vpack.c.bf16 %v434, %v433
      %v449 = vpack.c.bf16 %v436, %v435
      %v450 = vpack.c.bf16 %v438, %v437
      %v451 = vpack.c.bf16 %v440, %v439
      %v452 = vpack.c.bf16 %v442, %v441
      %v453 = vpack.c.bf16 %v444, %v443
      %v454 = vpack.c.bf16 %v446, %v445
      %v455 = vld [vmem:[%s4] sm:$0xf]
      %v456 = vld [vmem:[%s4 + $0x4] sm:$0xf]
      %v457 = vld [vmem:[%s4 + $0x8] sm:$0xf]
      %v458 = vld [vmem:[%s4 + $0xc] sm:$0xf]
      %v459 = vld [vmem:[%s4 + $0x10] sm:$0xf]
      %v460 = vld [vmem:[%s4 + $0x14] sm:$0xf]
      %v461 = vld [vmem:[%s4 + $0x18] sm:$0xf]
      %v462 = vld [vmem:[%s4 + $0x1c] sm:$0xf]
      %v463 = vld [vmem:[%s4 + $0x20] sm:$0xf]
      %v464 = vld [vmem:[%s4 + $0x24] sm:$0xf]
      %v465 = vld [vmem:[%s4 + $0x28] sm:$0xf]
      %v466 = vld [vmem:[%s4 + $0x2c] sm:$0xf]
      %v467 = vld [vmem:[%s4 + $0x30] sm:$0xf]
      %v468 = vld [vmem:[%s4 + $0x34] sm:$0xf]
      %v469 = vld [vmem:[%s4 + $0x38] sm:$0xf]
      %v470 = vld [vmem:[%s4 + $0x3c] sm:$0xf]
      %v471 = vld [vmem:[#allocation8] sm:$0xf]
      %v472 = vld [vmem:[#allocation8 + $0x4] sm:$0xf]
      %v473 = vld [vmem:[#allocation8 + $0x8] sm:$0xf]
      %v474 = vld [vmem:[#allocation8 + $0xc] sm:$0xf]
      %v475 = vld [vmem:[#allocation8 + $0x10] sm:$0xf]
      %v476 = vld [vmem:[#allocation8 + $0x14] sm:$0xf]
      %v477 = vld [vmem:[#allocation8 + $0x18] sm:$0xf]
      %v478 = vld [vmem:[#allocation8 + $0x1c] sm:$0xf]
      %v479 = vld [vmem:[#allocation8 + $0x20] sm:$0xf]
      %v480 = vld [vmem:[#allocation8 + $0x24] sm:$0xf]
      %v481 = vld [vmem:[#allocation8 + $0x28] sm:$0xf]
      %v482 = vld [vmem:[#allocation8 + $0x2c] sm:$0xf]
      %v483 = vld [vmem:[#allocation8 + $0x30] sm:$0xf]
      %v484 = vld [vmem:[#allocation8 + $0x34] sm:$0xf]
      %v485 = vld [vmem:[#allocation8 + $0x38] sm:$0xf]
      %v486 = vld [vmem:[#allocation8 + $0x3c] sm:$0xf]
      %v487 = vld [vmem:[%s4 + $0x40] sm:$0xf]
      %v488 = vld [vmem:[%s4 + $0x44] sm:$0xf]
      %v489 = vld [vmem:[%s4 + $0x48] sm:$0xf]
      %v490 = vld [vmem:[%s4 + $0x4c] sm:$0xf]
      %v491 = vld [vmem:[%s4 + $0x50] sm:$0xf]
      %v492 = vld [vmem:[%s4 + $0x54] sm:$0xf]
      %v493 = vld [vmem:[%s4 + $0x58] sm:$0xf]
      %v494 = vld [vmem:[%s4 + $0x5c] sm:$0xf]
      %v495 = vld [vmem:[%s4 + $0x60] sm:$0xf]
      %v496 = vld [vmem:[%s4 + $0x64] sm:$0xf]
      %v497 = vld [vmem:[%s4 + $0x68] sm:$0xf]
      %v498 = vld [vmem:[%s4 + $0x6c] sm:$0xf]
      %v499 = vld [vmem:[%s4 + $0x70] sm:$0xf]
      %v500 = vld [vmem:[%s4 + $0x74] sm:$0xf]
      %v501 = vld [vmem:[%s4 + $0x78] sm:$0xf]
      %v502 = vld [vmem:[%s4 + $0x7c] sm:$0xf]
      %v519 = vunpack.c.l.b16 %v471
      %v520 = vunpack.c.l.b16 %v472
      %v521 = vunpack.c.l.b16 %v473
      %v522 = vunpack.c.l.b16 %v474
      %v523 = vunpack.c.l.b16 %v475
      %v524 = vunpack.c.l.b16 %v476
      %v525 = vunpack.c.l.b16 %v477
      %v526 = vunpack.c.l.b16 %v478
      %v527 = vunpack.c.l.b16 %v479
      %v528 = vunpack.c.l.b16 %v480
      %v529 = vunpack.c.l.b16 %v481
      %v530 = vunpack.c.l.b16 %v482
      %v531 = vunpack.c.l.b16 %v483
      %v532 = vunpack.c.l.b16 %v484
      %v533 = vunpack.c.l.b16 %v485
      %v534 = vunpack.c.l.b16 %v486
      %v535 = vpack.c.b16 %v520, %v519
      %v536 = vpack.c.b16 %v522, %v521
      %v537 = vpack.c.b16 %v524, %v523
      %v538 = vpack.c.b16 %v526, %v525
      %v539 = vpack.c.b16 %v528, %v527
      %v540 = vpack.c.b16 %v530, %v529
      %v541 = vpack.c.b16 %v532, %v531
      %v542 = vpack.c.b16 %v534, %v533
      %v567 = vunpack.c.l.b16 %v487
      %v568 = vunpack.c.l.b16 %v488
      %v569 = vunpack.c.l.b16 %v489
      %v570 = vunpack.c.l.b16 %v490
      %v571 = vunpack.c.l.b16 %v491
      %v572 = vunpack.c.l.b16 %v492
      %v573 = vunpack.c.l.b16 %v493
      %v574 = vunpack.c.l.b16 %v494
      %v575 = vunpack.c.l.b16 %v495
      %v576 = vunpack.c.l.b16 %v496
      %v577 = vunpack.c.l.b16 %v497
      %v578 = vunpack.c.l.b16 %v498
      %v579 = vunpack.c.l.b16 %v499
      %v580 = vunpack.c.l.b16 %v500
      %v581 = vunpack.c.l.b16 %v501
      %v582 = vunpack.c.l.b16 %v502
      %v583 = vpack.c.b16 %v568, %v567
      %v584 = vpack.c.b16 %v570, %v569
      %v585 = vpack.c.b16 %v572, %v571
      %v586 = vpack.c.b16 %v574, %v573
      %v587 = vpack.c.b16 %v576, %v575
      %v588 = vpack.c.b16 %v578, %v577
      %v589 = vpack.c.b16 %v580, %v579
      %v590 = vpack.c.b16 %v582, %v581
      %599 = vmatpush.bf16.msra.mxu0 %v590
      %600 = vmatpush.bf16.msra.mxu0 %v589
      %601 = vmatpush.bf16.msra.mxu0 %v588
      %602 = vmatpush.bf16.msra.mxu0 %v587
      %603 = vmatpush.bf16.msra.mxu0 %v586
      %604 = vmatpush.bf16.msra.mxu0 %v585
      %605 = vmatpush.bf16.msra.mxu0 %v584
      %606 = vmatpush.bf16.msra.mxu0 %v583
      %607 = vmatmul.bf16.gmra.mxu0 %v535
      %v608 = vpop.f32.mrf.mxu0
      %v609 = vadd.f32 0.0, %v608
      %v610 = vpop.f32.mrf.mxu0
      %v611 = vadd.f32 0.0, %v610
      %612 = vmatmul.bf16.gmra.mxu0 %v536
      %v613 = vpop.f32.mrf.mxu0
      %v614 = vadd.f32 0.0, %v613
      %v615 = vpop.f32.mrf.mxu0
      %v616 = vadd.f32 0.0, %v615
      %617 = vmatmul.bf16.gmra.mxu0 %v537
      %v618 = vpop.f32.mrf.mxu0
      %v619 = vadd.f32 0.0, %v618
      %v620 = vpop.f32.mrf.mxu0
      %v621 = vadd.f32 0.0, %v620
      %622 = vmatmul.bf16.gmra.mxu0 %v538
      %v623 = vpop.f32.mrf.mxu0
      %v624 = vadd.f32 0.0, %v623
      %v625 = vpop.f32.mrf.mxu0
      %v626 = vadd.f32 0.0, %v625
      %627 = vmatmul.bf16.gmra.mxu0 %v539
      %v628 = vpop.f32.mrf.mxu0
      %v629 = vadd.f32 0.0, %v628
      %v630 = vpop.f32.mrf.mxu0
      %v631 = vadd.f32 0.0, %v630
      %632 = vmatmul.bf16.gmra.mxu0 %v540
      %v633 = vpop.f32.mrf.mxu0
      %v634 = vadd.f32 0.0, %v633
      %v635 = vpop.f32.mrf.mxu0
      %v636 = vadd.f32 0.0, %v635
      %637 = vmatmul.bf16.gmra.mxu0 %v541
      %v638 = vpop.f32.mrf.mxu0
      %v639 = vadd.f32 0.0, %v638
      %v640 = vpop.f32.mrf.mxu0
      %v641 = vadd.f32 0.0, %v640
      %642 = vmatmul.bf16.gmra.mxu0 %v542
      %v643 = vpop.f32.mrf.mxu0
      %v644 = vadd.f32 0.0, %v643
      %v645 = vpop.f32.mrf.mxu0
      %v646 = vadd.f32 0.0, %v645
      %647 = vdwg.mxu0
      %v664 = vunpack.c.l.b16 %v455
      %v665 = vunpack.c.l.b16 %v456
      %v666 = vunpack.c.l.b16 %v457
      %v667 = vunpack.c.l.b16 %v458
      %v668 = vunpack.c.l.b16 %v459
      %v669 = vunpack.c.l.b16 %v460
      %v670 = vunpack.c.l.b16 %v461
      %v671 = vunpack.c.l.b16 %v462
      %v672 = vunpack.c.l.b16 %v463
      %v673 = vunpack.c.l.b16 %v464
      %v674 = vunpack.c.l.b16 %v465
      %v675 = vunpack.c.l.b16 %v466
      %v676 = vunpack.c.l.b16 %v467
      %v677 = vunpack.c.l.b16 %v468
      %v678 = vunpack.c.l.b16 %v469
      %v679 = vunpack.c.l.b16 %v470
      %v680 = vpack.c.b16 %v665, %v664
      %v681 = vpack.c.b16 %v667, %v666
      %v682 = vpack.c.b16 %v669, %v668
      %v683 = vpack.c.b16 %v671, %v670
      %v684 = vpack.c.b16 %v673, %v672
      %v685 = vpack.c.b16 %v675, %v674
      %v686 = vpack.c.b16 %v677, %v676
      %v687 = vpack.c.b16 %v679, %v678
      %696 = vmatpush.bf16.msra.mxu0 %v687
      %697 = vmatpush.bf16.msra.mxu0 %v686
      %698 = vmatpush.bf16.msra.mxu0 %v685
      %699 = vmatpush.bf16.msra.mxu0 %v684
      %700 = vmatpush.bf16.msra.mxu0 %v683
      %701 = vmatpush.bf16.msra.mxu0 %v682
      %702 = vmatpush.bf16.msra.mxu0 %v681
      %703 = vmatpush.bf16.msra.mxu0 %v680
      %704 = vmatmul.bf16.gmra.mxu0 %v447
      %v705 = vpop.f32.mrf.mxu0
      %v706 = vadd.f32 %v609, %v705
      %v707 = vpop.f32.mrf.mxu0
      %v708 = vadd.f32 %v611, %v707
      %709 = vmatmul.bf16.gmra.mxu0 %v448
      %v710 = vpop.f32.mrf.mxu0
      %v711 = vadd.f32 %v614, %v710
      %v712 = vpop.f32.mrf.mxu0
      %v713 = vadd.f32 %v616, %v712
      %714 = vmatmul.bf16.gmra.mxu0 %v449
      %v715 = vpop.f32.mrf.mxu0
      %v716 = vadd.f32 %v619, %v715
      %v717 = vpop.f32.mrf.mxu0
      %v718 = vadd.f32 %v621, %v717
      %719 = vmatmul.bf16.gmra.mxu0 %v450
      %v720 = vpop.f32.mrf.mxu0
      %v721 = vadd.f32 %v624, %v720
      %v722 = vpop.f32.mrf.mxu0
      %v723 = vadd.f32 %v626, %v722
      %724 = vmatmul.bf16.gmra.mxu0 %v451
      %v725 = vpop.f32.mrf.mxu0
      %v726 = vadd.f32 %v629, %v725
      %v727 = vpop.f32.mrf.mxu0
      %v728 = vadd.f32 %v631, %v727
      %729 = vmatmul.bf16.gmra.mxu0 %v452
      %v730 = vpop.f32.mrf.mxu0
      %v731 = vadd.f32 %v634, %v730
      %v732 = vpop.f32.mrf.mxu0
      %v733 = vadd.f32 %v636, %v732
      %734 = vmatmul.bf16.gmra.mxu0 %v453
      %v735 = vpop.f32.mrf.mxu0
      %v736 = vadd.f32 %v639, %v735
      %v737 = vpop.f32.mrf.mxu0
      %v738 = vadd.f32 %v641, %v737
      %739 = vmatmul.bf16.gmra.mxu0 %v454
      %v740 = vpop.f32.mrf.mxu0
      %v741 = vadd.f32 %v644, %v740
      %v742 = vpop.f32.mrf.mxu0
      %v743 = vadd.f32 %v646, %v742
      %744 = vdwg.mxu0
      %v745 = vld [vmem:[%s5] sm:$0x1]
      %v747 = vperm.slane %v745, 0
      %v749 = vadd.f32 %v706, %v747
      %v750 = vadd.f32 %v708, %v747
      %v751 = vadd.f32 %v711, %v747
      %v752 = vadd.f32 %v713, %v747
      %v753 = vadd.f32 %v716, %v747
      %v754 = vadd.f32 %v718, %v747
      %v755 = vadd.f32 %v721, %v747
      %v756 = vadd.f32 %v723, %v747
      %v757 = vadd.f32 %v726, %v747
      %v758 = vadd.f32 %v728, %v747
      %v759 = vadd.f32 %v731, %v747
      %v760 = vadd.f32 %v733, %v747
      %v761 = vadd.f32 %v736, %v747
      %v762 = vadd.f32 %v738, %v747
      %v763 = vadd.f32 %v741, %v747
      %v764 = vadd.f32 %v743, %v747
      %v765 = vmax.f32 %v749, 0.0
      %v766 = vmax.f32 %v750, 0.0
      %v767 = vmax.f32 %v751, 0.0
      %v768 = vmax.f32 %v752, 0.0
      %v769 = vmax.f32 %v753, 0.0
      %v770 = vmax.f32 %v754, 0.0
      %v771 = vmax.f32 %v755, 0.0
      %v772 = vmax.f32 %v756, 0.0
      %v773 = vmax.f32 %v757, 0.0
      %v774 = vmax.f32 %v758, 0.0
      %v775 = vmax.f32 %v759, 0.0
      %v776 = vmax.f32 %v760, 0.0
      %v777 = vmax.f32 %v761, 0.0
      %v778 = vmax.f32 %v762, 0.0
      %v779 = vmax.f32 %v763, 0.0
      %v780 = vmax.f32 %v764, 0.0
      %v781 = vpack.c.bf16 %v765, %v765
      %v782 = vpack.c.bf16 %v766, %v766
      %v783 = vpack.c.bf16 %v767, %v767
      %v784 = vpack.c.bf16 %v768, %v768
      %v785 = vpack.c.bf16 %v769, %v769
      %v786 = vpack.c.bf16 %v770, %v770
      %v787 = vpack.c.bf16 %v771, %v771
      %v788 = vpack.c.bf16 %v772, %v772
      %v789 = vpack.c.bf16 %v773, %v773
      %v790 = vpack.c.bf16 %v774, %v774
      %v791 = vpack.c.bf16 %v775, %v775
      %v792 = vpack.c.bf16 %v776, %v776
      %v793 = vpack.c.bf16 %v777, %v777
      %v794 = vpack.c.bf16 %v778, %v778
      %v795 = vpack.c.bf16 %v779, %v779
      %v796 = vpack.c.bf16 %v780, %v780
      %797 = vst [vmem:[#allocation9] sm:$0xf] %v781
      %798 = vst [vmem:[#allocation9 + $0x4] sm:$0xf] %v782
      %799 = vst [vmem:[#allocation9 + $0x8] sm:$0xf] %v783
      %800 = vst [vmem:[#allocation9 + $0xc] sm:$0xf] %v784
      %801 = vst [vmem:[#allocation9 + $0x10] sm:$0xf] %v785
      %802 = vst [vmem:[#allocation9 + $0x14] sm:$0xf] %v786
      %803 = vst [vmem:[#allocation9 + $0x18] sm:$0xf] %v787
      %804 = vst [vmem:[#allocation9 + $0x1c] sm:$0xf] %v788
      %805 = vst [vmem:[#allocation9 + $0x20] sm:$0xf] %v789
      %806 = vst [vmem:[#allocation9 + $0x24] sm:$0xf] %v790
      %807 = vst [vmem:[#allocation9 + $0x28] sm:$0xf] %v791
      %808 = vst [vmem:[#allocation9 + $0x2c] sm:$0xf] %v792
      %809 = vst [vmem:[#allocation9 + $0x30] sm:$0xf] %v793
      %810 = vst [vmem:[#allocation9 + $0x34] sm:$0xf] %v794
      %811 = vst [vmem:[#allocation9 + $0x38] sm:$0xf] %v795
      %812 = vst [vmem:[#allocation9 + $0x3c] sm:$0xf] %v796
    $region45: #{tpu_custom_call.1} parent=1 // pred_fallthru
      _
    // Predicated region
    $region46: #{tpu_custom_call.1} parent=1 // pred_check
      _
    $region47: #{tpu_custom_call.1} parent=1 // pred_check_branch
      %814 = sbr.rel (0) target = $region49
    $region48: #{tpu_custom_call.1} parent=1 // pred_region
      %816 = vsyncadd [#allocation5], 0
      %s817 = sshll.u32 [#allocation9], 4
      %s818 = int_to_ptr.vmem [resolvable:$true] %s817
      %s819 = sshll.u32 %s6, 4
      %s820 = int_to_ptr.hbm [resolvable:$true] %s819
      %825 = dma.vmem_to_hbm [thread:$0]  %s818, 1024, %s820, [#allocation5], 64, 64, 4
    $region49: #{tpu_custom_call.1} parent=1 // pred_fallthru
      _
    // Predicated region
    $region50: #{tpu_custom_call.1} parent=1 // pred_check
      _
    $region51: #{tpu_custom_call.1} parent=1 // pred_check_branch
      %827 = sbr.rel (0) target = $region53
    $region52: #{tpu_custom_call.1} parent=1 // pred_region
      %829 = dma.done [#allocation5], 1024
    $region53: #{tpu_custom_call.1} parent=1 // pred_fallthru
      _
    %830 = vsyncpa [#allocation4], 1
    %831 = vsyncpa [#allocation7], 1
    %832 = vsyncpa [#allocation5], 1

</llo_original>
